<compile_context>
chip_gen: v5e
topology: v5e:2x2
jax: 0.10.0
libtpu: 0.0.40
codegen_flags: <defaults>
</compile_context>

<pallas_src>
import functools

import jax
import jax.numpy as jnp
from jax import lax
from jax.experimental import pallas as pl
from jax.experimental.pallas import tpu as pltpu


# ---------------------------------------------------------------------------
# Parameter setup (mirrors torch __init__ exactly, including the quirk that
# two_i ranges over max_seq_len rather than d — so it only shape-checks when
# d == max_seq_len, just like the reference module).
# ---------------------------------------------------------------------------
def build_pe(d, max_seq_len, dtype=jnp.float32):
    pos = jnp.arange(0, max_seq_len, dtype=jnp.float32)[:, None]          # (L, 1)
    two_i = jnp.arange(0, max_seq_len, 2, dtype=jnp.float32)              # (L//2,)
    div = jnp.power(jnp.float32(10000.0), two_i / jnp.float32(d))         # (L//2,)
    pe = jnp.zeros((max_seq_len, d), dtype=jnp.float32)
    pe = pe.at[:, 0::2].set(jnp.sin(pos / div))
    pe = pe.at[:, 1::2].set(jnp.cos(pos / div))
    return pe.astype(dtype)


# ---------------------------------------------------------------------------
# Tiling helpers
# ---------------------------------------------------------------------------
_MAX_LANE_WIDTH = 4096              # cap for the folded last dim


def _tile_cap_bytes():
    """Per-block budget.  Worst-case resident set is ~6 blocks (2x x-in,
    2x out, 2x PE): 2 MiB -> 12 MiB (safe for v5e's 16 MiB scoped default),
    4 MiB -> 24 MiB (safe for v6e / v7x's 32 MiB scoped default)."""
    try:
        kind = jax.devices()[0].device_kind.lower()
    except Exception:
        return 2 * 1024 * 1024
    if ("v6" in kind) or ("v7" in kind) or ("tpu7" in kind):
        return 4 * 1024 * 1024
    return 2 * 1024 * 1024          # v5e / unknown / interpret: conservative


def _sublane_multiple(dtype):
    """Packed sublane count: 8 for 4-byte, 16 for 2-byte, 32 for 1-byte."""
    return {4: 8, 2: 16, 1: 32}.get(jnp.dtype(dtype).itemsize, 8)


def _pick_lane_width(total_minor):
    """Largest multiple of 128 dividing total_minor (capped).  Returns None if
    total_minor is not a multiple of 128."""
    if total_minor % 128 != 0:
        return None
    for cand in range(min(_MAX_LANE_WIDTH, total_minor), 127, -128):
        if total_minor % cand == 0:
            return cand
    return 128


def _pick_row_tile(rows, row_bytes, sub, cap):
    """Largest multiple-of-`sub` divisor of `rows` whose block fits `cap`.
    `rows` is guaranteed to be a multiple of `sub`."""
    max_rows = max(sub, min(rows, cap // max(row_bytes, 1)))
    best = sub
    t = sub
    while t <= max_rows:
        if rows % t == 0:
            best = t
        t += sub
    return best


def _pick_batch_tile(batch, block_bytes, cap):
    """Largest divisor of `batch` so that TB*block fits `cap`."""
    best = 1
    for tb in range(1, batch + 1):
        if batch % tb == 0 and tb * block_bytes <= cap:
            best = tb
    return best


# ---------------------------------------------------------------------------
# Kernels
# ---------------------------------------------------------------------------
def add_pe_kernel(x_ref, pe_ref, o_ref):
    # x_ref: (TB, TR, C) block; pe_ref: (TR, C), indexed only by the row-tile
    # grid axis so it stays VMEM-resident across the inner batch axis.
    o_ref[...] = (x_ref[...] + pe_ref[...]).astype(o_ref.dtype)


def add_pe_dropout_kernel(seed_ref, x_ref, pe_ref, o_ref, *,
                          thr24, scale, rows_total, cols_total, tb, tr):
    # Training-mode inverted dropout.  RNG cannot match torch bit-for-bit;
    # uses a counter-based murmur3-style hash of (seed, global element index)
    # built from plain jnp integer ops (portable: Mosaic TPU + interpret).
    r = pl.program_id(0)
    b = pl.program_id(1)

    y = x_ref[...].astype(jnp.float32) + pe_ref[...].astype(jnp.float32)
    shape = y.shape                                                 # (TB, TR, C)

    gb = lax.broadcasted_iota(jnp.int32, shape, 0) + b * tb          # global batch
    gr = lax.broadcasted_iota(jnp.int32, shape, 1) + r * tr          # global row
    gc = lax.broadcasted_iota(jnp.int32, shape, 2)                   # lane index
    lin = (gb * rows_total + gr) * cols_total + gc                   # global counter

    seed_off = seed_ref[0].astype(jnp.uint32) * jnp.uint32(0x9E3779B9)
    h = lin.astype(jnp.uint32) + seed_off
    # murmur3 fmix32 finalizer: good avalanche on sequential counters, VPU-only.
    h = h ^ (h >> 16)
    h = h * jnp.uint32(0x85EBCA6B)
    h = h ^ (h >> 13)
    h = h * jnp.uint32(0xC2B2AE35)
    h = h ^ (h >> 16)

    keep = (h >> 8) >= jnp.uint32(thr24)        # P(drop) = thr24 / 2^24
    out = jnp.where(keep, y * jnp.float32(scale), jnp.float32(0.0))
    o_ref[...] = out.astype(o_ref.dtype)


# ---------------------------------------------------------------------------
# Wrapper
# ---------------------------------------------------------------------------
def positional_encoding_forward(x, pe, *, dropout_rate=0.3, training=False, seed=0):
    B, S, F = x.shape
    L, D = pe.shape
    # The reference module's math only broadcasts for the "square" case:
    #   pe[:, :S].repeat(B, 1, 1) is (B, L, S) and must add to x = (B, S, F),
    # so S == L and F == S; build_pe already forces D == L.  Consequently the
    # whole pe buffer IS the (S, F) slab — no wrapper-side slice/copy needed.
    assert S == L and F == S and D == F, (
        "Faithful port of the reference module requires seq == max_seq_len, "
        "feature == seq and d == max_seq_len.")

    x_dtype = x.dtype
    pe = pe.astype(x_dtype)
    itemsize = jnp.dtype(x_dtype).itemsize
    sub = _sublane_multiple(x_dtype)
    cap = _tile_cap_bytes()

    # ---- lane-dense canonical layout (B, R, C), C a multiple of 128 ----------
    pad_cols = 0
    if F % 128 == 0:
        R, C = S, F
        x2, pe2 = x, pe
        folded = False
    else:
        C = _pick_lane_width(S * F)
        if C is not None:
            R = (S * F) // C
            x2 = x.reshape(B, R, C)             # contiguous row-major -> bitcast
            pe2 = pe.reshape(R, C)
            folded = True
        else:
            # Pad the minor dim up to the next multiple of 128 instead of
            # emitting lane-sparse (masked) stores; slice the output back.
            C = ((F + 127) // 128) * 128
            pad_cols = C - F
            R = S
            x2 = jnp.pad(x, ((0, 0), (0, 0), (0, pad_cols)))
            pe2 = jnp.pad(pe, ((0, 0), (0, pad_cols)))
            folded = False

    # ---- sublane-aligned rows (guards the old full-extent fallback) ----------
    pad_rows = 0
    if R % sub != 0:
        pad_rows = sub - (R % sub)
        x2 = jnp.pad(x2, ((0, 0), (0, pad_rows), (0, 0)))
        pe2 = jnp.pad(pe2, ((0, pad_rows), (0, 0)))
    Rp = R + pad_rows

    # ---- tile selection -------------------------------------------------------
    row_bytes = C * itemsize
    TR = _pick_row_tile(Rp, row_bytes, sub, cap)
    TB = 1
    if TR == Rp:
        # Per-batch slab is small: block over batch too to amortize grid-step
        # overhead and keep DMAs large.
        TB = _pick_batch_tile(B, Rp * row_bytes, cap)
    grid = (Rp // TR, B // TB)    # row tiles outer, batch inner -> the PE block
                                  # (indexed only by r) is never re-DMA'd per b.

    out_shape = jax.ShapeDtypeStruct((B, Rp, C), x_dtype)

    rate = float(dropout_rate)
    if training and rate > 0.0:
        if rate >= 1.0:                       # avoid 1/(1-rate) div-by-zero
            return jnp.zeros_like(x)
        thr24 = min(int(round(rate * (1 << 24))), (1 << 24) - 1)
        scale = 1.0 / (1.0 - rate)
        seed_arr = jnp.asarray([seed], dtype=jnp.int32)
        grid_spec = pltpu.PrefetchScalarGridSpec(
            num_scalar_prefetch=1,
            grid=grid,
            in_specs=[
                pl.BlockSpec((TB, TR, C), lambda r, b, s: (b, r, 0)),
                pl.BlockSpec((TR, C), lambda r, b, s: (r, 0)),
            ],
            out_specs=pl.BlockSpec((TB, TR, C), lambda r, b, s: (b, r, 0)),
        )
        out = pl.pallas_call(
            functools.partial(add_pe_dropout_kernel,
                              thr24=thr24, scale=scale,
                              rows_total=Rp, cols_total=C, tb=TB, tr=TR),
            out_shape=out_shape,
            grid_spec=grid_spec,
            compiler_params=pltpu.CompilerParams(
                # Per-element hash keying makes iterations order-independent,
                # so both axes are safe to shard across v7x's two TensorCores.
                dimension_semantics=("parallel", "parallel")),
        )(seed_arr, x2, pe2)
    else:
        grid_spec = pltpu.PrefetchScalarGridSpec(
            num_scalar_prefetch=0,
            grid=grid,
            in_specs=[
                pl.BlockSpec((TB, TR, C), lambda r, b: (b, r, 0)),
                pl.BlockSpec((TR, C), lambda r, b: (r, 0)),
            ],
            out_specs=pl.BlockSpec((TB, TR, C), lambda r, b: (b, r, 0)),
        )
        out = pl.pallas_call(
            add_pe_kernel,
            out_shape=out_shape,
            grid_spec=grid_spec,
            compiler_params=pltpu.CompilerParams(
                dimension_semantics=("parallel", "parallel")),
        )(x2, pe2)

    # ---- undo wrapper-side padding / folding ----------------------------------
    if pad_rows:
        out = out[:, :R, :]
    if pad_cols:
        out = out[:, :, :F]
    if folded:
        out = out.reshape(B, S, F)
    return out


# ---------------------------------------------------------------------------
# Demo / self-check
# ---------------------------------------------------------------------------
if __name__ == "__main__":
    key = jax.random.PRNGKey(0)

    # Case 1: lane-aligned square case (d == max_seq_len == seq == feature == 128).
    B, N = 2, 128
    pe = build_pe(N, N)
    x = jax.random.normal(key, (B, N, N), dtype=jnp.float32)

    out = jax.block_until_ready(
        positional_encoding_forward(x, pe, dropout_rate=0.3, training=False))
    ref = x + pe[None, :, :]
    assert out.shape == x.shape and out.dtype == x.dtype
    assert jnp.allclose(out, ref, atol=1e-6, rtol=1e-6)

    # Training path (inverted dropout applied inside the kernel).
    rate = 0.3
    out_t = jax.block_until_ready(
        positional_encoding_forward(x, pe, dropout_rate=rate, training=True, seed=7))
    scale = 1.0 / (1.0 - rate)
    kept = out_t != 0.0     # test artifact: an exact zero of (x+pe)*scale would be misread
    assert jnp.allclose(jnp.where(kept, out_t, 0.0),
                        jnp.where(kept, ref * scale, 0.0), atol=1e-5, rtol=1e-5)
    drop_frac = 1.0 - float(jnp.mean(kept.astype(jnp.float32)))
    assert 0.1 < drop_frac < 0.5, drop_frac

    # Case 2: small non-lane-aligned case (feature = 16) exercising the
    # (S, F) -> (R, C) lane fold plus sublane row padding.
    B2, N2 = 2, 16
    pe_s = build_pe(N2, N2)
    x_s = jax.random.normal(jax.random.PRNGKey(1), (B2, N2, N2), dtype=jnp.float32)
    out_s = jax.block_until_ready(
        positional_encoding_forward(x_s, pe_s, dropout_rate=0.3, training=False))
    ref_s = x_s + pe_s[None, :, :]
    assert jnp.allclose(out_s, ref_s, atol=1e-6, rtol=1e-6)

    print("KERNEL_OK")
</pallas_src>

<mosaic_0001>
module attributes {stable_mosaic.version = 11 : i64} {
  func.func @add_pe_kernel(%arg0: i32, %arg1: i32, %arg2: memref<2x128x128xf32, #tpu.memory_space<vmem>>, %arg3: memref<128x128xf32, #tpu.memory_space<vmem>>, %arg4: memref<2x128x128xf32, #tpu.memory_space<vmem>>) attributes {dimension_semantics = [#tpu.dimension_semantics<parallel>, #tpu.dimension_semantics<parallel>], iteration_bounds = array<i64: 1, 1>, scalar_prefetch = 0 : i64, scratch_operands = 0 : i64, tpu.core_type = #tpu.core_type<tc>, window_params = [{transform_indices = @transform_0, window_bounds = array<i64: 2, 128, 128>}, {transform_indices = @transform_1, window_bounds = array<i64: 128, 128>}, {transform_indices = @transform_2, window_bounds = array<i64: 2, 128, 128>}]} {
    %c0 = arith.constant 0 : index
    %c0_0 = arith.constant 0 : index
    %c0_1 = arith.constant 0 : index
    %0 = vector.load %arg2[%c0, %c0_0, %c0_1] : memref<2x128x128xf32, #tpu.memory_space<vmem>>, vector<2x128x128xf32>
    %c0_2 = arith.constant 0 : index
    %c0_3 = arith.constant 0 : index
    %1 = vector.load %arg3[%c0_2, %c0_3] : memref<128x128xf32, #tpu.memory_space<vmem>>, vector<128x128xf32>
    %2 = vector.shape_cast %1 : vector<128x128xf32> to vector<1x128x128xf32>
    %3 = vector.broadcast %2 : vector<1x128x128xf32> to vector<2x128x128xf32>
    %4 = arith.addf %0, %3 : vector<2x128x128xf32>
    %c0_4 = arith.constant 0 : index
    %c0_5 = arith.constant 0 : index
    %c0_6 = arith.constant 0 : index
    %5 = vector.load %arg4[%c0_4, %c0_5, %c0_6] : memref<2x128x128xf32, #tpu.memory_space<vmem>>, vector<2x128x128xf32>
    tpu.vector_store %arg4[%c0_4, %c0_5, %c0_6], %4 {strides = array<i32>} : memref<2x128x128xf32, #tpu.memory_space<vmem>>, vector<2x128x128xf32>,
    return
  }
  func.func @transform_0(%arg0: i32, %arg1: i32) -> (i32, i32, i32) {
    %c0_i32 = arith.constant 0 : i32
    %c0_i32_0 = arith.constant 0 : i32
    return %arg1, %arg0, %c0_i32 : i32, i32, i32
  }
  func.func @transform_1(%arg0: i32, %arg1: i32) -> (i32, i32) {
    %c0_i32 = arith.constant 0 : i32
    %c0_i32_0 = arith.constant 0 : i32
    return %arg0, %c0_i32 : i32, i32
  }
  func.func @transform_2(%arg0: i32, %arg1: i32) -> (i32, i32, i32) {
    %c0_i32 = arith.constant 0 : i32
    %c0_i32_0 = arith.constant 0 : i32
    return %arg1, %arg0, %c0_i32 : i32, i32, i32
  }
}

</mosaic_0001>

<llo_original>
// kernel: tpu_custom_call.1
$region0: #{tpu_custom_call.1}
  #allocation0 [shape = 'u32[]', space=smem, size = 0x4, offset = 0x4, fixed_abs, tag = 'smem constant byte address 0x4 - core index']
  #allocation1 [shape = 'u32[72,128]{1,0:T(1,128)}', space=vmem, size = 0x9000, scoped, tag = 'internal scratch']
  %s0 = inlined_call_operand.hbm [shape: f32[2,128,128], index: 0, kind: input, shape index: {}]
  %s1 = inlined_call_operand.hbm [shape: f32[128,128], index: 1, kind: input, shape index: {}]
  %s2 = inlined_call_operand.hbm [shape: f32[2,128,128], index: 2, kind: output, shape index: {}]
  %s3 = sld [smem:[#allocation0]]
  $region26: #{tpu_custom_call.1} parent=0
    _
  %s5 = ssub.s32 1, %s3
  %s6 = scalar_select 0, %s5, %s3
  $region1: #{tpu_custom_call.1} parent=0
    #allocation2 [shape = 'u8[131072]{0}', space=vmem, size = 0x20000, scoped, tag = 'input window, operand 0, single buffered']
    #allocation3 [shape = 's32[1]{0}', space=sflag, size = 0x4, scoped, tag = 'scoped memory for tpu_custom_call.1']
    #allocation4 [shape = 's32[1]{0}', space=sflag, size = 0x4, scoped, tag = 'scoped memory for tpu_custom_call.1']
    #allocation5 [shape = 'u8[65536]{0}', space=vmem, size = 0x10000, scoped, tag = 'input window, operand 1, single buffered']
    #allocation6 [shape = 's32[1]{0}', space=sflag, size = 0x4, scoped, tag = 'scoped memory for tpu_custom_call.1']
    #allocation7 [shape = 'u8[131072]{0}', space=vmem, size = 0x20000, scoped, tag = 'output window, operand 0, single buffered']
    %7 = vsyncpa [#allocation3], 0
    %8 = vsyncpa [#allocation6], 0
    %9 = vsyncpa [#allocation4], 0
    // Predicated region
    $region2: #{tpu_custom_call.1} parent=1 // pred_check
      _
    $region3: #{tpu_custom_call.1} parent=1 // pred_check_branch
      %11 = sbr.rel (0) target = $region5
    $region4: #{tpu_custom_call.1} parent=1 // pred_region
      %13 = vsyncadd [#allocation3], 0
      %s14 = sshll.u32 %s0, 4
      %s15 = int_to_ptr.hbm [resolvable:$true] %s14
      %s16 = sshll.u32 [#allocation2], 4
      %s17 = int_to_ptr.vmem [resolvable:$true] %s16
      %22 = dma.hbm_to_vmem [thread:$0]  %s15, 4096, %s17, [#allocation3], 128, 128, 8
    $region5: #{tpu_custom_call.1} parent=1 // pred_fallthru
      _
    // Predicated region
    $region6: #{tpu_custom_call.1} parent=1 // pred_check
      _
    $region7: #{tpu_custom_call.1} parent=1 // pred_check_branch
      %24 = sbr.rel (0) target = $region9
    $region8: #{tpu_custom_call.1} parent=1 // pred_region
      %26 = vsyncadd [#allocation6], 0
      %s27 = sshll.u32 %s1, 4
      %s28 = int_to_ptr.hbm [resolvable:$true] %s27
      %s29 = sshll.u32 [#allocation5], 4
      %s30 = int_to_ptr.vmem [resolvable:$true] %s29
      %35 = dma.hbm_to_vmem [thread:$0]  %s28, 2048, %s30, [#allocation6], 128, 128, 8
    $region9: #{tpu_custom_call.1} parent=1 // pred_fallthru
      _
    // Predicated region
    $region10: #{tpu_custom_call.1} parent=1 // pred_check
      _
    $region11: #{tpu_custom_call.1} parent=1 // pred_check_branch
      %37 = sbr.rel (0) target = $region13
    $region12: #{tpu_custom_call.1} parent=1 // pred_region
      %39 = dma.done [#allocation3], 4096
    $region13: #{tpu_custom_call.1} parent=1 // pred_fallthru
      _
    // Predicated region
    $region14: #{tpu_custom_call.1} parent=1 // pred_check
      _
    $region15: #{tpu_custom_call.1} parent=1 // pred_check_branch
      %41 = sbr.rel (0) target = $region17
    $region16: #{tpu_custom_call.1} parent=1 // pred_region
      %43 = dma.done [#allocation6], 2048
    $region17: #{tpu_custom_call.1} parent=1 // pred_fallthru
      _
    %v44 = vld [vmem:[#allocation2] sm:$0xff]
    %v45 = vld [vmem:[#allocation2 + $0x8] sm:$0xff]
    %v46 = vld [vmem:[#allocation2 + $0x10] sm:$0xff]
    %v47 = vld [vmem:[#allocation2 + $0x18] sm:$0xff]
    %v48 = vld [vmem:[#allocation2 + $0x20] sm:$0xff]
    %v49 = vld [vmem:[#allocation2 + $0x28] sm:$0xff]
    %v50 = vld [vmem:[#allocation2 + $0x30] sm:$0xff]
    %v51 = vld [vmem:[#allocation2 + $0x38] sm:$0xff]
    %v52 = vld [vmem:[#allocation2 + $0x40] sm:$0xff]
    %v53 = vld [vmem:[#allocation2 + $0x48] sm:$0xff]
    %v54 = vld [vmem:[#allocation2 + $0x50] sm:$0xff]
    %v55 = vld [vmem:[#allocation2 + $0x58] sm:$0xff]
    %v56 = vld [vmem:[#allocation2 + $0x60] sm:$0xff]
    %v57 = vld [vmem:[#allocation2 + $0x68] sm:$0xff]
    %v58 = vld [vmem:[#allocation2 + $0x70] sm:$0xff]
    %v59 = vld [vmem:[#allocation2 + $0x78] sm:$0xff]
    %v60 = vld [vmem:[#allocation2 + $0x80] sm:$0xff]
    %v61 = vld [vmem:[#allocation2 + $0x88] sm:$0xff]
    %v62 = vld [vmem:[#allocation2 + $0x90] sm:$0xff]
    %v63 = vld [vmem:[#allocation2 + $0x98] sm:$0xff]
    %v64 = vld [vmem:[#allocation2 + $0xa0] sm:$0xff]
    %v65 = vld [vmem:[#allocation2 + $0xa8] sm:$0xff]
    %v66 = vld [vmem:[#allocation2 + $0xb0] sm:$0xff]
    %v67 = vld [vmem:[#allocation2 + $0xb8] sm:$0xff]
    %v68 = vld [vmem:[#allocation2 + $0xc0] sm:$0xff]
    %v69 = vld [vmem:[#allocation2 + $0xc8] sm:$0xff]
    %v70 = vld [vmem:[#allocation2 + $0xd0] sm:$0xff]
    %v71 = vld [vmem:[#allocation2 + $0xd8] sm:$0xff]
    %v72 = vld [vmem:[#allocation2 + $0xe0] sm:$0xff]
    %v73 = vld [vmem:[#allocation2 + $0xe8] sm:$0xff]
    %v74 = vld [vmem:[#allocation2 + $0xf0] sm:$0xff]
    %v75 = vld [vmem:[#allocation2 + $0xf8] sm:$0xff]
    %v76 = vld [vmem:[#allocation5] sm:$0xff]
    %v77 = vld [vmem:[#allocation5 + $0x8] sm:$0xff]
    %v78 = vld [vmem:[#allocation5 + $0x10] sm:$0xff]
    %v79 = vld [vmem:[#allocation5 + $0x18] sm:$0xff]
    %v80 = vld [vmem:[#allocation5 + $0x20] sm:$0xff]
    %v81 = vld [vmem:[#allocation5 + $0x28] sm:$0xff]
    %v82 = vld [vmem:[#allocation5 + $0x30] sm:$0xff]
    %v83 = vld [vmem:[#allocation5 + $0x38] sm:$0xff]
    %v84 = vld [vmem:[#allocation5 + $0x40] sm:$0xff]
    %v85 = vld [vmem:[#allocation5 + $0x48] sm:$0xff]
    %v86 = vld [vmem:[#allocation5 + $0x50] sm:$0xff]
    %v87 = vld [vmem:[#allocation5 + $0x58] sm:$0xff]
    %v88 = vld [vmem:[#allocation5 + $0x60] sm:$0xff]
    %v89 = vld [vmem:[#allocation5 + $0x68] sm:$0xff]
    %v90 = vld [vmem:[#allocation5 + $0x70] sm:$0xff]
    %v91 = vld [vmem:[#allocation5 + $0x78] sm:$0xff]
    %v92 = vadd.f32 %v44, %v76
    %v93 = vadd.f32 %v45, %v77
    %v94 = vadd.f32 %v46, %v78
    %v95 = vadd.f32 %v47, %v79
    %v96 = vadd.f32 %v48, %v80
    %v97 = vadd.f32 %v49, %v81
    %v98 = vadd.f32 %v50, %v82
    %v99 = vadd.f32 %v51, %v83
    %v100 = vadd.f32 %v52, %v84
    %v101 = vadd.f32 %v53, %v85
    %v102 = vadd.f32 %v54, %v86
    %v103 = vadd.f32 %v55, %v87
    %v104 = vadd.f32 %v56, %v88
    %v105 = vadd.f32 %v57, %v89
    %v106 = vadd.f32 %v58, %v90
    %v107 = vadd.f32 %v59, %v91
    %v108 = vadd.f32 %v60, %v76
    %v109 = vadd.f32 %v61, %v77
    %v110 = vadd.f32 %v62, %v78
    %v111 = vadd.f32 %v63, %v79
    %v112 = vadd.f32 %v64, %v80
    %v113 = vadd.f32 %v65, %v81
    %v114 = vadd.f32 %v66, %v82
    %v115 = vadd.f32 %v67, %v83
    %v116 = vadd.f32 %v68, %v84
    %v117 = vadd.f32 %v69, %v85
    %v118 = vadd.f32 %v70, %v86
    %v119 = vadd.f32 %v71, %v87
    %v120 = vadd.f32 %v72, %v88
    %v121 = vadd.f32 %v73, %v89
    %v122 = vadd.f32 %v74, %v90
    %v123 = vadd.f32 %v75, %v91
    %124 = vst [vmem:[#allocation7] sm:$0xff] %v92
    %125 = vst [vmem:[#allocation7 + $0x8] sm:$0xff] %v93
    %126 = vst [vmem:[#allocation7 + $0x10] sm:$0xff] %v94
    %127 = vst [vmem:[#allocation7 + $0x18] sm:$0xff] %v95
    %128 = vst [vmem:[#allocation7 + $0x20] sm:$0xff] %v96
    %129 = vst [vmem:[#allocation7 + $0x28] sm:$0xff] %v97
    %130 = vst [vmem:[#allocation7 + $0x30] sm:$0xff] %v98
    %131 = vst [vmem:[#allocation7 + $0x38] sm:$0xff] %v99
    %132 = vst [vmem:[#allocation7 + $0x40] sm:$0xff] %v100
    %133 = vst [vmem:[#allocation7 + $0x48] sm:$0xff] %v101
    %134 = vst [vmem:[#allocation7 + $0x50] sm:$0xff] %v102
    %135 = vst [vmem:[#allocation7 + $0x58] sm:$0xff] %v103
    %136 = vst [vmem:[#allocation7 + $0x60] sm:$0xff] %v104
    %137 = vst [vmem:[#allocation7 + $0x68] sm:$0xff] %v105
    %138 = vst [vmem:[#allocation7 + $0x70] sm:$0xff] %v106
    %139 = vst [vmem:[#allocation7 + $0x78] sm:$0xff] %v107
    %140 = vst [vmem:[#allocation7 + $0x80] sm:$0xff] %v108
    %141 = vst [vmem:[#allocation7 + $0x88] sm:$0xff] %v109
    %142 = vst [vmem:[#allocation7 + $0x90] sm:$0xff] %v110
    %143 = vst [vmem:[#allocation7 + $0x98] sm:$0xff] %v111
    %144 = vst [vmem:[#allocation7 + $0xa0] sm:$0xff] %v112
    %145 = vst [vmem:[#allocation7 + $0xa8] sm:$0xff] %v113
    %146 = vst [vmem:[#allocation7 + $0xb0] sm:$0xff] %v114
    %147 = vst [vmem:[#allocation7 + $0xb8] sm:$0xff] %v115
    %148 = vst [vmem:[#allocation7 + $0xc0] sm:$0xff] %v116
    %149 = vst [vmem:[#allocation7 + $0xc8] sm:$0xff] %v117
    %150 = vst [vmem:[#allocation7 + $0xd0] sm:$0xff] %v118
    %151 = vst [vmem:[#allocation7 + $0xd8] sm:$0xff] %v119
    %152 = vst [vmem:[#allocation7 + $0xe0] sm:$0xff] %v120
    %153 = vst [vmem:[#allocation7 + $0xe8] sm:$0xff] %v121
    %154 = vst [vmem:[#allocation7 + $0xf0] sm:$0xff] %v122
    %155 = vst [vmem:[#allocation7 + $0xf8] sm:$0xff] %v123
    // Predicated region
    $region18: #{tpu_custom_call.1} parent=1 // pred_check
      _
    $region19: #{tpu_custom_call.1} parent=1 // pred_check_branch
      %157 = sbr.rel (0) target = $region21
    $region20: #{tpu_custom_call.1} parent=1 // pred_region
      %159 = vsyncadd [#allocation4], 0
      %s160 = sshll.u32 [#allocation7], 4
      %s161 = int_to_ptr.vmem [resolvable:$true] %s160
      %s162 = sshll.u32 %s2, 4
      %s163 = int_to_ptr.hbm [resolvable:$true] %s162
      %168 = dma.vmem_to_hbm [thread:$0]  %s161, 4096, %s163, [#allocation4], 128, 128, 8
    $region21: #{tpu_custom_call.1} parent=1 // pred_fallthru
      _
    // Predicated region
    $region22: #{tpu_custom_call.1} parent=1 // pred_check
      _
    $region23: #{tpu_custom_call.1} parent=1 // pred_check_branch
      %170 = sbr.rel (0) target = $region25
    $region24: #{tpu_custom_call.1} parent=1 // pred_region
      %172 = dma.done [#allocation4], 4096
    $region25: #{tpu_custom_call.1} parent=1 // pred_fallthru
      _
    %173 = vsyncpa [#allocation3], 1
    %174 = vsyncpa [#allocation6], 1
    %175 = vsyncpa [#allocation4], 1

</llo_original>
